<compile_context>
chip_gen: v6e
topology: v6e:2x2x1
jax: 0.10.0
libtpu: 0.0.40
codegen_flags: <defaults>
</compile_context>

<pallas_src>
import numpy as np
import jax
import jax.numpy as jnp
from jax.experimental import pallas as pl
from jax.experimental.pallas import tpu as pltpu

A = 32                                  # virtual_atom_num (module's dim_in assumes 32)
BN_EPS = 1e-5
DIM_IN = 4 * A * 3 + 9 + 16 + 32        # 441, exactly as in the module
DIM_IN_PAD = 512                        # layer-1 contraction padded to a multiple of 128


def _round_up(x, m):
    return ((x + m - 1) // m) * m


# ------------------------------ Pallas kernel ------------------------------ #
def geofeat_edge_kernel(hE_ref, Vsd_ref, Rt_ref,
                        Wvd_ref, bvd_ref, W1_ref, b1_ref,
                        W2_ref, b2_ref, W3m_ref, WmT_ref, bme_ref,
                        out_ref):
    f32 = jnp.float32

    def mm(x, w_ref):
        w = w_ref[...]
        return jnp.dot(x.astype(w.dtype), w, preferred_element_type=f32)

    hE = hE_ref[...]                   # [TE, H]   activation dtype (bf16 by default)
    Vsd = Vsd_ref[...].astype(f32)     # [TE, 192] V_local[src] | V_local[dst], coord-major
    Rt = Rt_ref[...]                   # [TE, 16]  [R row-major (9) | trans (3) | pad (4)], f32
    te = hE.shape[0]

    # virtual_direct(h_E): single fused [TE,H]@[H,3A] matmul (coordinate-major cols)
    Ve = mm(hE, Wvd_ref) + bvd_ref[...]                               # [TE, 96] f32

    # hoisted lane broadcasts: 9 rotation entries + 3 translations -> [TE, A] each,
    # reused for both the edge-atom and src-atom rigid transforms.
    Rb = [jnp.broadcast_to(Rt[:, j:j + 1], (te, A)) for j in range(9)]
    tb = [jnp.broadcast_to(Rt[:, 9 + j:10 + j], (te, A)) for j in range(3)]

    Ve_c = [Ve[:, k * A:(k + 1) * A] for k in range(3)]
    Vs_c = [Vsd[:, k * A:(k + 1) * A] for k in range(3)]
    Vd_c = [Vsd[:, 96 + k * A:96 + (k + 1) * A] for k in range(3)]

    # Qt = T_ts.apply(Ks), RKs = R @ V_local[src], QRK = <V_local[dst], RKs>
    Qt_e, Qt_s = [], []
    QRK = jnp.zeros((te, A), f32)
    for i in range(3):
        re = Rb[3 * i] * Ve_c[0] + Rb[3 * i + 1] * Ve_c[1] + Rb[3 * i + 2] * Ve_c[2]
        rs = Rb[3 * i] * Vs_c[0] + Rb[3 * i + 1] * Vs_c[1] + Rb[3 * i + 2] * Vs_c[2]
        Qt_e.append(re + tb[i])
        Qt_s.append(rs + tb[i])
        QRK = QRK + Vd_c[i] * rs            # RKs carries no translation

    # D = rbf(||trans||, 0, 50, 16)
    t0, t1, t2 = Rt[:, 9:10], Rt[:, 10:11], Rt[:, 11:12]
    tnorm = jnp.sqrt(t0 * t0 + t1 * t1 + t2 * t2)                     # [TE, 1]
    centers = jax.lax.broadcasted_iota(jnp.int32, (te, 16), 1).astype(f32) * (50.0 / 15.0)
    z = (tnorm - centers) * (16.0 / 50.0)
    D = jnp.exp(-z * z)                                               # [TE, 16]

    # we_condition layer 1: ONE fused K=512 matmul over the packed feature row.
    feat = jnp.concatenate(
        [Ve, Vsd[:, :96]] + Qt_e + Qt_s
        + [Rt[:, :9], D, QRK, jnp.zeros((te, DIM_IN_PAD - DIM_IN), f32)],
        axis=-1)                                                      # [TE, 512]
    h1 = jnp.maximum(mm(feat, W1_ref) + b1_ref[...], 0.0)             # Linear+BN+ReLU
    h2 = jnp.maximum(mm(h1, W2_ref) + b2_ref[...], 0.0)               # Linear+BN+ReLU

    # layer 3 folded into MergeEG:
    #   out = h_E @ Wm_top + h2 @ (W3^T @ Wm_bot) + (b3 @ Wm_bot + bm)
    out = mm(hE, WmT_ref) + mm(h2, W3m_ref) + bme_ref[...]
    out_ref[...] = out.astype(out_ref.dtype)


# ------------------------- parameters (torch layout) ----------------------- #
def _linear(key, d_out, d_in):
    kw, kb = jax.random.split(key)
    w = jax.random.normal(kw, (d_out, d_in), jnp.float32) / np.sqrt(d_in)
    b = 0.1 * jax.random.normal(kb, (d_out,), jnp.float32)
    return w, b


def _bn(key, d):
    k1, k2, k3, k4 = jax.random.split(key, 4)
    gamma = 1.0 + 0.1 * jax.random.normal(k1, (d,), jnp.float32)
    beta = 0.1 * jax.random.normal(k2, (d,), jnp.float32)
    mean = 0.1 * jax.random.normal(k3, (d,), jnp.float32)
    var = 1.0 + 0.1 * jax.random.uniform(k4, (d,), jnp.float32)
    return gamma, beta, mean, var


def init_params(key, num_hidden):
    ks = jax.random.split(key, 8)
    return {
        "va": _linear(ks[0], A * 3, num_hidden),        # virtual_atom
        "vd": _linear(ks[1], A * 3, num_hidden),        # virtual_direct
        "l1": _linear(ks[2], num_hidden, DIM_IN),       # we_condition (geo_layer = 3)
        "bn1": _bn(ks[3], num_hidden),
        "l2": _linear(ks[4], num_hidden, num_hidden),
        "bn2": _bn(ks[5], num_hidden),
        "l3": _linear(ks[6], num_hidden, num_hidden),
        "merge": _linear(ks[7], num_hidden, 2 * num_hidden),   # MergeEG
    }


def pack_kernel_params(params, num_hidden, matmul_dtype=jnp.bfloat16):
    """Permute / fold / pad torch-layout weights into the kernel's layout."""
    Hd = num_hidden
    # coordinate-major permutation: packed col c*A + n  <->  torch col 3*n + c
    coord_major = np.concatenate([3 * np.arange(A) + c for c in range(3)])   # len 96

    Wva, bva = params["va"]
    Wvd, bvd = params["vd"]
    Wva_p = Wva.T[:, coord_major]                 # [H, 3A] (stays f32, XLA side)
    bva_p = bva[coord_major][None, :]             # [1, 3A]
    Wvd_p = Wvd.T[:, coord_major]
    bvd_p = bvd[coord_major][None, :]

    def fold_bn(W, b, bn):   # inference-mode BN folded into preceding Linear (x@W form)
        g, beta, m, v = bn
        s = g / jnp.sqrt(v + BN_EPS)
        return (W * s[:, None]).T, (b - m) * s + beta

    W1x, b1f = fold_bn(*params["l1"], params["bn1"])     # [441, H], [H]
    W2x, b2f = fold_bn(*params["l2"], params["bn2"])     # [H, H],   [H]
    W3, b3 = params["l3"]                                # [H, H],   [H]
    Wm, bm = params["merge"]                             # [H, 2H],  [H]

    # row permutation of W1 to the kernel's packed feature layout, + zero pad to 512
    perm1 = np.concatenate([coord_major,                 # Ve  (Ks part 0)
                            96 + coord_major,            # Vs  (Ks part 1)
                            192 + coord_major,           # Qt_e
                            288 + coord_major,           # Qt_s
                            np.arange(12 * A, DIM_IN)])  # quat(9) | D(16) | QRK(32)
    W1_p = jnp.concatenate([W1x[perm1],
                            jnp.zeros((DIM_IN_PAD - DIM_IN, Hd), jnp.float32)], axis=0)

    # Fold l3 into MergeEG (exact: no nonlinearity between them).
    WmX = Wm.T                                           # [2H, H]
    WmT_p = WmX[:Hd]                                     # acts on h_E
    WmB = WmX[Hd:]                                       # acts on G_e
    W3m = W3.T @ WmB                                     # [H, H]
    bme = b3 @ WmB + bm                                  # [H]

    cast = lambda w: w.astype(matmul_dtype)   # matmul operands only; biases stay f32
    return {
        "Wva": Wva_p, "bva": bva_p,           # XLA-side per-node matmul (f32)
        "Wvd": cast(Wvd_p), "bvd": bvd_p,
        "W1": cast(W1_p), "b1": b1f[None, :],
        "W2": cast(W2x), "b2": b2f[None, :],
        "W3m": cast(W3m), "WmT": cast(WmT_p), "bme": bme[None, :],
    }


# ------------------------------ wrapper ------------------------------------ #
def geofeat_pallas(params, h_V, h_E, rot_mats, trans, edge_idx,
                   tile_edges=None, matmul_dtype=jnp.bfloat16):
    """GeoFeat forward. matmul_dtype=bf16 keeps f32 accumulation + f32 geometry."""
    src, dst = edge_idx[0], edge_idx[1]
    E, Hd = h_E.shape
    w = pack_kernel_params(params, Hd, matmul_dtype)
    act_dtype = matmul_dtype

    # Per-node virtual_atom stays in plain XLA: the tiny [N,H]@[H,96] GEMM fuses
    # with the src/dst row gather + bf16 cast (no [N,96] HBM round trip, no extra
    # pallas_call overhead).
    # TODO(synk): an in-kernel gather would need scalar-prefetch pl.Element index maps.
    Vl = (h_V @ w["Wva"] + w["bva"]).astype(act_dtype)            # [N, 96] coord-major
    Vsd = jnp.concatenate([Vl[src], Vl[dst]], axis=-1)            # [E, 192] one DMA block
    hEa = h_E.astype(act_dtype)

    # one lane-dense f32 aux block per edge: [R row-major (9) | trans (3) | pad (4)]
    Rt = jnp.concatenate([rot_mats.reshape(E, 9), trans,
                          jnp.zeros((E, 4), jnp.float32)], axis=-1)   # [E, 16]

    # Ragged edge tiling: no pads, no out[:E] slice. TE is a multiple of 16 (bf16
    # sublane packing); aim for >=2 grid steps so both v7x TensorCores get work.
    if tile_edges is not None:
        TE = int(tile_edges)
    else:
        TE = min(1024, _round_up((E + 1) // 2, 16))
        if TE >= E:
            TE = E                        # single full-extent block for tiny E
    grid = (pl.cdiv(E, TE),)

    row = lambda d: pl.BlockSpec((TE, d), lambda i: (i, 0))
    full = lambda a: pl.BlockSpec(a.shape, lambda i: (0,) * a.ndim)
    weights = (w["Wvd"], w["bvd"], w["W1"], w["b1"], w["W2"], w["b2"],
               w["W3m"], w["WmT"], w["bme"])

    out = pl.pallas_call(
        geofeat_edge_kernel,
        out_shape=jax.ShapeDtypeStruct((E, Hd), jnp.float32),
        grid_spec=pltpu.PrefetchScalarGridSpec(
            num_scalar_prefetch=0,
            grid=grid,
            in_specs=[row(Hd), row(192), row(16)] + [full(x) for x in weights],
            out_specs=row(Hd)),
        compiler_params=pltpu.CompilerParams(
            dimension_semantics=("parallel",),
            vmem_limit_bytes=32 * 1024 * 1024),
    )(hEa, Vsd, Rt, *weights)
    return out


# ------------------------ pure-JAX reference (torch semantics) -------------- #
def reference_forward(params, h_V, h_E, R, tvec, src, dst):
    N, E = h_V.shape[0], h_E.shape[0]
    Wva, bva = params["va"]
    Wvd, bvd = params["vd"]
    Vl = (h_V @ Wva.T + bva).reshape(N, A, 3)
    Ve = (h_E @ Wvd.T + bvd).reshape(E, A, 3)
    Ks = jnp.concatenate([Ve, Vl[src]], axis=1)                       # [E, 2A, 3]
    Qt = jnp.einsum("eij,enj->eni", R, Ks) + tvec[:, None, :]
    quat = R.reshape(E, 9)
    RKs = jnp.einsum("eij,enj->eni", R, Vl[src])
    QRK = jnp.einsum("enj,enj->en", Vl[dst], RKs)
    d = jnp.linalg.norm(tvec, axis=-1, keepdims=True)
    centers = jnp.linspace(0.0, 50.0, 16)
    z = (d - centers[None, :]) / (50.0 / 16.0)
    D = jnp.exp(-z ** 2)
    Hf = jnp.concatenate([Ks.reshape(E, -1), Qt.reshape(E, -1), quat, D, QRK], axis=1)

    def bn(x, p):
        g, b, m, v = p
        return (x - m) / jnp.sqrt(v + BN_EPS) * g + b

    W1, b1 = params["l1"]
    W2, b2 = params["l2"]
    W3, b3 = params["l3"]
    h = jnp.maximum(bn(Hf @ W1.T + b1, params["bn1"]), 0.0)
    h = jnp.maximum(bn(h @ W2.T + b2, params["bn2"]), 0.0)
    Ge = h @ W3.T + b3
    Wm, bm = params["merge"]
    return jnp.concatenate([h_E, Ge], axis=-1) @ Wm.T + bm


# --------------------------------- main ------------------------------------ #
if __name__ == "__main__":
    key = jax.random.PRNGKey(0)
    num_atom, num_edge, num_hidden = 8, 16, 32
    k = jax.random.split(key, 7)

    params = init_params(k[0], num_hidden)
    h_V = jax.random.normal(k[1], (num_atom, num_hidden), jnp.float32)
    h_E = jax.random.normal(k[2], (num_edge, num_hidden), jnp.float32)
    rot_mats = jax.random.normal(k[3], (num_edge, 3, 3), jnp.float32)   # T_ts._rots._rot_mats[:, 0]
    trans = 3.0 * jax.random.normal(k[4], (num_edge, 3), jnp.float32)   # T_ts._trans[:, 0]
    src = jax.random.randint(k[5], (num_edge,), 0, num_atom)
    dst = jax.random.randint(k[6], (num_edge,), 0, num_atom)
    edge_idx = jnp.stack([src, dst])

    ref = reference_forward(params, h_V, h_E, rot_mats, trans, src, dst)

    # f32 path: tight check of the fused math (BN fold, W3->Merge fold, layouts, ragged grid)
    out_f32 = jax.block_until_ready(
        geofeat_pallas(params, h_V, h_E, rot_mats, trans, edge_idx,
                       matmul_dtype=jnp.float32))
    err32 = jnp.max(jnp.abs(out_f32 - ref)) / (jnp.max(jnp.abs(ref)) + 1e-6)
    assert out_f32.shape == (num_edge, num_hidden)
    assert bool(err32 < 1e-3), f"f32 kernel/reference mismatch: rel err = {err32}"

    # default bf16 path (production setting on v5e/v6e/v7x): f32 accumulation, looser tol
    out_bf16 = jax.block_until_ready(
        geofeat_pallas(params, h_V, h_E, rot_mats, trans, edge_idx))
    errbf = jnp.max(jnp.abs(out_bf16 - ref)) / (jnp.max(jnp.abs(ref)) + 1e-6)
    assert out_bf16.shape == (num_edge, num_hidden)
    assert bool(errbf < 3e-2), f"bf16 kernel/reference mismatch: rel err = {errbf}"

    print("KERNEL_OK")
</pallas_src>

<mosaic_0001>
module attributes {stable_mosaic.version = 11 : i64} {
  func.func @geofeat_edge_kernel(%arg0: i32, %arg1: memref<16x32xf32, #tpu.memory_space<vmem>>, %arg2: memref<16x192xf32, #tpu.memory_space<vmem>>, %arg3: memref<16x16xf32, #tpu.memory_space<vmem>>, %arg4: memref<32x96xf32, #tpu.memory_space<vmem>>, %arg5: memref<1x96xf32, #tpu.memory_space<vmem>>, %arg6: memref<512x32xf32, #tpu.memory_space<vmem>>, %arg7: memref<1x32xf32, #tpu.memory_space<vmem>>, %arg8: memref<32x32xf32, #tpu.memory_space<vmem>>, %arg9: memref<1x32xf32, #tpu.memory_space<vmem>>, %arg10: memref<32x32xf32, #tpu.memory_space<vmem>>, %arg11: memref<32x32xf32, #tpu.memory_space<vmem>>, %arg12: memref<1x32xf32, #tpu.memory_space<vmem>>, %arg13: memref<16x32xf32, #tpu.memory_space<vmem>>) attributes {dimension_semantics = [#tpu.dimension_semantics<parallel>], iteration_bounds = array<i64: 1>, scalar_prefetch = 0 : i64, scratch_operands = 0 : i64, tpu.core_type = #tpu.core_type<tc>, window_params = [{transform_indices = @transform_0, window_bounds = array<i64: 16, 32>}, {transform_indices = @transform_1, window_bounds = array<i64: 16, 192>}, {transform_indices = @transform_2, window_bounds = array<i64: 16, 16>}, {pipeline_mode = #tpu.pipeline_mode<synchronous>, transform_indices = @transform_3, window_bounds = array<i64: 32, 96>}, {pipeline_mode = #tpu.pipeline_mode<synchronous>, transform_indices = @transform_4, window_bounds = array<i64: 1, 96>}, {pipeline_mode = #tpu.pipeline_mode<synchronous>, transform_indices = @transform_5, window_bounds = array<i64: 512, 32>}, {pipeline_mode = #tpu.pipeline_mode<synchronous>, transform_indices = @transform_6, window_bounds = array<i64: 1, 32>}, {pipeline_mode = #tpu.pipeline_mode<synchronous>, transform_indices = @transform_7, window_bounds = array<i64: 32, 32>}, {pipeline_mode = #tpu.pipeline_mode<synchronous>, transform_indices = @transform_8, window_bounds = array<i64: 1, 32>}, {pipeline_mode = #tpu.pipeline_mode<synchronous>, transform_indices = @transform_9, window_bounds = array<i64: 32, 32>}, {pipeline_mode = #tpu.pipeline_mode<synchronous>, transform_indices = @transform_10, window_bounds = array<i64: 32, 32>}, {pipeline_mode = #tpu.pipeline_mode<synchronous>, transform_indices = @transform_11, window_bounds = array<i64: 1, 32>}, {transform_indices = @transform_12, window_bounds = array<i64: 16, 32>}]} {
    %c0 = arith.constant 0 : index
    %c0_0 = arith.constant 0 : index
    %0 = vector.load %arg1[%c0, %c0_0] : memref<16x32xf32, #tpu.memory_space<vmem>>, vector<16x32xf32>
    %c0_1 = arith.constant 0 : index
    %c0_2 = arith.constant 0 : index
    %1 = vector.load %arg2[%c0_1, %c0_2] : memref<16x192xf32, #tpu.memory_space<vmem>>, vector<16x192xf32>
    %c0_3 = arith.constant 0 : index
    %c0_4 = arith.constant 0 : index
    %2 = vector.load %arg3[%c0_3, %c0_4] : memref<16x16xf32, #tpu.memory_space<vmem>>, vector<16x16xf32>
    %c0_5 = arith.constant 0 : index
    %c0_6 = arith.constant 0 : index
    %3 = vector.load %arg4[%c0_5, %c0_6] : memref<32x96xf32, #tpu.memory_space<vmem>>, vector<32x96xf32>
    %cst = arith.constant dense<0.000000e+00> : vector<16x96xf32>
    %4 = tpu.matmul %0, %3, %cst {dimension_numbers = #tpu.dot_dimension_numbers<[1], [0], [0], [1], [0, 0, 1, 1], [], []>} : vector<16x32xf32>, vector<32x96xf32>, vector<16x96xf32> -> vector<16x96xf32>
    %c0_7 = arith.constant 0 : index
    %c0_8 = arith.constant 0 : index
    %5 = vector.load %arg5[%c0_7, %c0_8] : memref<1x96xf32, #tpu.memory_space<vmem>>, vector<1x96xf32>
    %6 = vector.broadcast %5 : vector<1x96xf32> to vector<16x96xf32>
    %7 = arith.addf %4, %6 : vector<16x96xf32>
    %8 = vector.extract_strided_slice %2 {offsets = [0, 0], sizes = [16, 1], strides = [1, 1]} : vector<16x16xf32> to vector<16x1xf32>
    %9 = vector.shape_cast %8 : vector<16x1xf32> to vector<16x1xf32>
    %10 = vector.broadcast %9 : vector<16x1xf32> to vector<16x32xf32>
    %11 = vector.extract_strided_slice %2 {offsets = [0, 1], sizes = [16, 1], strides = [1, 1]} : vector<16x16xf32> to vector<16x1xf32>
    %12 = vector.shape_cast %11 : vector<16x1xf32> to vector<16x1xf32>
    %13 = vector.broadcast %12 : vector<16x1xf32> to vector<16x32xf32>
    %14 = vector.extract_strided_slice %2 {offsets = [0, 2], sizes = [16, 1], strides = [1, 1]} : vector<16x16xf32> to vector<16x1xf32>
    %15 = vector.shape_cast %14 : vector<16x1xf32> to vector<16x1xf32>
    %16 = vector.broadcast %15 : vector<16x1xf32> to vector<16x32xf32>
    %17 = vector.extract_strided_slice %2 {offsets = [0, 3], sizes = [16, 1], strides = [1, 1]} : vector<16x16xf32> to vector<16x1xf32>
    %18 = vector.shape_cast %17 : vector<16x1xf32> to vector<16x1xf32>
    %19 = vector.broadcast %18 : vector<16x1xf32> to vector<16x32xf32>
    %20 = vector.extract_strided_slice %2 {offsets = [0, 4], sizes = [16, 1], strides = [1, 1]} : vector<16x16xf32> to vector<16x1xf32>
    %21 = vector.shape_cast %20 : vector<16x1xf32> to vector<16x1xf32>
    %22 = vector.broadcast %21 : vector<16x1xf32> to vector<16x32xf32>
    %23 = vector.extract_strided_slice %2 {offsets = [0, 5], sizes = [16, 1], strides = [1, 1]} : vector<16x16xf32> to vector<16x1xf32>
    %24 = vector.shape_cast %23 : vector<16x1xf32> to vector<16x1xf32>
    %25 = vector.broadcast %24 : vector<16x1xf32> to vector<16x32xf32>
    %26 = vector.extract_strided_slice %2 {offsets = [0, 6], sizes = [16, 1], strides = [1, 1]} : vector<16x16xf32> to vector<16x1xf32>
    %27 = vector.shape_cast %26 : vector<16x1xf32> to vector<16x1xf32>
    %28 = vector.broadcast %27 : vector<16x1xf32> to vector<16x32xf32>
    %29 = vector.extract_strided_slice %2 {offsets = [0, 7], sizes = [16, 1], strides = [1, 1]} : vector<16x16xf32> to vector<16x1xf32>
    %30 = vector.shape_cast %29 : vector<16x1xf32> to vector<16x1xf32>
    %31 = vector.broadcast %30 : vector<16x1xf32> to vector<16x32xf32>
    %32 = vector.extract_strided_slice %2 {offsets = [0, 8], sizes = [16, 1], strides = [1, 1]} : vector<16x16xf32> to vector<16x1xf32>
    %33 = vector.shape_cast %32 : vector<16x1xf32> to vector<16x1xf32>
    %34 = vector.broadcast %33 : vector<16x1xf32> to vector<16x32xf32>
    %35 = vector.extract_strided_slice %2 {offsets = [0, 9], sizes = [16, 1], strides = [1, 1]} : vector<16x16xf32> to vector<16x1xf32>
    %36 = vector.shape_cast %35 : vector<16x1xf32> to vector<16x1xf32>
    %37 = vector.broadcast %36 : vector<16x1xf32> to vector<16x32xf32>
    %38 = vector.extract_strided_slice %2 {offsets = [0, 10], sizes = [16, 1], strides = [1, 1]} : vector<16x16xf32> to vector<16x1xf32>
    %39 = vector.shape_cast %38 : vector<16x1xf32> to vector<16x1xf32>
    %40 = vector.broadcast %39 : vector<16x1xf32> to vector<16x32xf32>
    %41 = vector.extract_strided_slice %2 {offsets = [0, 11], sizes = [16, 1], strides = [1, 1]} : vector<16x16xf32> to vector<16x1xf32>
    %42 = vector.shape_cast %41 : vector<16x1xf32> to vector<16x1xf32>
    %43 = vector.broadcast %42 : vector<16x1xf32> to vector<16x32xf32>
    %44 = vector.extract_strided_slice %7 {offsets = [0, 0], sizes = [16, 32], strides = [1, 1]} : vector<16x96xf32> to vector<16x32xf32>
    %45 = vector.extract_strided_slice %7 {offsets = [0, 32], sizes = [16, 32], strides = [1, 1]} : vector<16x96xf32> to vector<16x32xf32>
    %46 = vector.extract_strided_slice %7 {offsets = [0, 64], sizes = [16, 32], strides = [1, 1]} : vector<16x96xf32> to vector<16x32xf32>
    %47 = vector.extract_strided_slice %1 {offsets = [0, 0], sizes = [16, 32], strides = [1, 1]} : vector<16x192xf32> to vector<16x32xf32>
    %48 = vector.extract_strided_slice %1 {offsets = [0, 32], sizes = [16, 32], strides = [1, 1]} : vector<16x192xf32> to vector<16x32xf32>
    %49 = vector.extract_strided_slice %1 {offsets = [0, 64], sizes = [16, 32], strides = [1, 1]} : vector<16x192xf32> to vector<16x32xf32>
    %50 = vector.extract_strided_slice %1 {offsets = [0, 96], sizes = [16, 32], strides = [1, 1]} : vector<16x192xf32> to vector<16x32xf32>
    %51 = vector.extract_strided_slice %1 {offsets = [0, 128], sizes = [16, 32], strides = [1, 1]} : vector<16x192xf32> to vector<16x32xf32>
    %52 = vector.extract_strided_slice %1 {offsets = [0, 160], sizes = [16, 32], strides = [1, 1]} : vector<16x192xf32> to vector<16x32xf32>
    %cst_9 = arith.constant 0.000000e+00 : f32
    %53 = vector.broadcast %cst_9 : f32 to vector<16x32xf32>
    %54 = arith.mulf %10, %44 : vector<16x32xf32>
    %55 = arith.mulf %13, %45 : vector<16x32xf32>
    %56 = arith.addf %54, %55 : vector<16x32xf32>
    %57 = arith.mulf %16, %46 : vector<16x32xf32>
    %58 = arith.addf %56, %57 : vector<16x32xf32>
    %59 = arith.mulf %10, %47 : vector<16x32xf32>
    %60 = arith.mulf %13, %48 : vector<16x32xf32>
    %61 = arith.addf %59, %60 : vector<16x32xf32>
    %62 = arith.mulf %16, %49 : vector<16x32xf32>
    %63 = arith.addf %61, %62 : vector<16x32xf32>
    %64 = arith.addf %58, %37 : vector<16x32xf32>
    %65 = arith.addf %63, %37 : vector<16x32xf32>
    %66 = arith.mulf %50, %63 : vector<16x32xf32>
    %67 = arith.addf %53, %66 : vector<16x32xf32>
    %68 = arith.mulf %19, %44 : vector<16x32xf32>
    %69 = arith.mulf %22, %45 : vector<16x32xf32>
    %70 = arith.addf %68, %69 : vector<16x32xf32>
    %71 = arith.mulf %25, %46 : vector<16x32xf32>
    %72 = arith.addf %70, %71 : vector<16x32xf32>
    %73 = arith.mulf %19, %47 : vector<16x32xf32>
    %74 = arith.mulf %22, %48 : vector<16x32xf32>
    %75 = arith.addf %73, %74 : vector<16x32xf32>
    %76 = arith.mulf %25, %49 : vector<16x32xf32>
    %77 = arith.addf %75, %76 : vector<16x32xf32>
    %78 = arith.addf %72, %40 : vector<16x32xf32>
    %79 = arith.addf %77, %40 : vector<16x32xf32>
    %80 = arith.mulf %51, %77 : vector<16x32xf32>
    %81 = arith.addf %67, %80 : vector<16x32xf32>
    %82 = arith.mulf %28, %44 : vector<16x32xf32>
    %83 = arith.mulf %31, %45 : vector<16x32xf32>
    %84 = arith.addf %82, %83 : vector<16x32xf32>
    %85 = arith.mulf %34, %46 : vector<16x32xf32>
    %86 = arith.addf %84, %85 : vector<16x32xf32>
    %87 = arith.mulf %28, %47 : vector<16x32xf32>
    %88 = arith.mulf %31, %48 : vector<16x32xf32>
    %89 = arith.addf %87, %88 : vector<16x32xf32>
    %90 = arith.mulf %34, %49 : vector<16x32xf32>
    %91 = arith.addf %89, %90 : vector<16x32xf32>
    %92 = arith.addf %86, %43 : vector<16x32xf32>
    %93 = arith.addf %91, %43 : vector<16x32xf32>
    %94 = arith.mulf %52, %91 : vector<16x32xf32>
    %95 = arith.addf %81, %94 : vector<16x32xf32>
    %96 = vector.extract_strided_slice %2 {offsets = [0, 9], sizes = [16, 1], strides = [1, 1]} : vector<16x16xf32> to vector<16x1xf32>
    %97 = vector.extract_strided_slice %2 {offsets = [0, 10], sizes = [16, 1], strides = [1, 1]} : vector<16x16xf32> to vector<16x1xf32>
    %98 = vector.extract_strided_slice %2 {offsets = [0, 11], sizes = [16, 1], strides = [1, 1]} : vector<16x16xf32> to vector<16x1xf32>
    %99 = arith.mulf %96, %96 : vector<16x1xf32>
    %100 = arith.mulf %97, %97 : vector<16x1xf32>
    %101 = arith.addf %99, %100 : vector<16x1xf32>
    %102 = arith.mulf %98, %98 : vector<16x1xf32>
    %103 = arith.addf %101, %102 : vector<16x1xf32>
    %104 = math.sqrt %103 : vector<16x1xf32>
    %105 = tpu.iota {dimensions = array<i32: 1>} : vector<16x16xi32>
    %106 = arith.sitofp %105 : vector<16x16xi32> to vector<16x16xf32>
    %cst_10 = arith.constant 3.33333325 : f32
    %107 = vector.broadcast %cst_10 : f32 to vector<16x16xf32>
    %108 = arith.mulf %106, %107 : vector<16x16xf32>
    %109 = vector.broadcast %104 : vector<16x1xf32> to vector<16x16xf32>
    %110 = arith.subf %109, %108 : vector<16x16xf32>
    %cst_11 = arith.constant 3.200000e-01 : f32
    %111 = vector.broadcast %cst_11 : f32 to vector<16x16xf32>
    %112 = arith.mulf %110, %111 : vector<16x16xf32>
    %cst_12 = arith.constant 0.000000e+00 : f32
    %113 = vector.broadcast %cst_12 : f32 to vector<16x16xf32>
    %114 = arith.subf %113, %112 : vector<16x16xf32>
    %115 = arith.mulf %114, %112 : vector<16x16xf32>
    %116 = math.exp %115 : vector<16x16xf32>
    %117 = vector.extract_strided_slice %1 {offsets = [0, 0], sizes = [16, 96], strides = [1, 1]} : vector<16x192xf32> to vector<16x96xf32>
    %118 = vector.extract_strided_slice %2 {offsets = [0, 0], sizes = [16, 9], strides = [1, 1]} : vector<16x16xf32> to vector<16x9xf32>
    %cst_13 = arith.constant 0.000000e+00 : f32
    %119 = vector.broadcast %cst_13 : f32 to vector<16x71xf32>
    %120 = tpu.concatenate %7, %117, %64, %78, %92, %65, %79, %93, %118, %116, %95, %119 in 1 : vector<16x96xf32>, vector<16x96xf32>, vector<16x32xf32>, vector<16x32xf32>, vector<16x32xf32>, vector<16x32xf32>, vector<16x32xf32>, vector<16x32xf32>, vector<16x9xf32>, vector<16x16xf32>, vector<16x32xf32>, vector<16x71xf32> -> vector<16x512xf32>
    %c0_14 = arith.constant 0 : index
    %c0_15 = arith.constant 0 : index
    %121 = vector.load %arg6[%c0_14, %c0_15] : memref<512x32xf32, #tpu.memory_space<vmem>>, vector<512x32xf32>
    %cst_16 = arith.constant dense<0.000000e+00> : vector<16x32xf32>
    %122 = tpu.matmul %120, %121, %cst_16 {dimension_numbers = #tpu.dot_dimension_numbers<[1], [0], [0], [1], [0, 0, 1, 1], [], []>} : vector<16x512xf32>, vector<512x32xf32>, vector<16x32xf32> -> vector<16x32xf32>
    %c0_17 = arith.constant 0 : index
    %c0_18 = arith.constant 0 : index
    %123 = vector.load %arg7[%c0_17, %c0_18] : memref<1x32xf32, #tpu.memory_space<vmem>>, vector<1x32xf32>
    %124 = vector.broadcast %123 : vector<1x32xf32> to vector<16x32xf32>
    %125 = arith.addf %122, %124 : vector<16x32xf32>
    %cst_19 = arith.constant 0.000000e+00 : f32
    %126 = vector.broadcast %cst_19 : f32 to vector<16x32xf32>
    %127 = arith.maximumf %125, %126 : vector<16x32xf32>
    %c0_20 = arith.constant 0 : index
    %c0_21 = arith.constant 0 : index
    %128 = vector.load %arg8[%c0_20, %c0_21] : memref<32x32xf32, #tpu.memory_space<vmem>>, vector<32x32xf32>
    %cst_22 = arith.constant dense<0.000000e+00> : vector<16x32xf32>
    %129 = tpu.matmul %127, %128, %cst_22 {dimension_numbers = #tpu.dot_dimension_numbers<[1], [0], [0], [1], [0, 0, 1, 1], [], []>} : vector<16x32xf32>, vector<32x32xf32>, vector<16x32xf32> -> vector<16x32xf32>
    %c0_23 = arith.constant 0 : index
    %c0_24 = arith.constant 0 : index
    %130 = vector.load %arg9[%c0_23, %c0_24] : memref<1x32xf32, #tpu.memory_space<vmem>>, vector<1x32xf32>
    %131 = vector.broadcast %130 : vector<1x32xf32> to vector<16x32xf32>
    %132 = arith.addf %129, %131 : vector<16x32xf32>
    %cst_25 = arith.constant 0.000000e+00 : f32
    %133 = vector.broadcast %cst_25 : f32 to vector<16x32xf32>
    %134 = arith.maximumf %132, %133 : vector<16x32xf32>
    %c0_26 = arith.constant 0 : index
    %c0_27 = arith.constant 0 : index
    %135 = vector.load %arg11[%c0_26, %c0_27] : memref<32x32xf32, #tpu.memory_space<vmem>>, vector<32x32xf32>
    %cst_28 = arith.constant dense<0.000000e+00> : vector<16x32xf32>
    %136 = tpu.matmul %0, %135, %cst_28 {dimension_numbers = #tpu.dot_dimension_numbers<[1], [0], [0], [1], [0, 0, 1, 1], [], []>} : vector<16x32xf32>, vector<32x32xf32>, vector<16x32xf32> -> vector<16x32xf32>
    %c0_29 = arith.constant 0 : index
    %c0_30 = arith.constant 0 : index
    %137 = vector.load %arg10[%c0_29, %c0_30] : memref<32x32xf32, #tpu.memory_space<vmem>>, vector<32x32xf32>
    %cst_31 = arith.constant dense<0.000000e+00> : vector<16x32xf32>
    %138 = tpu.matmul %134, %137, %cst_31 {dimension_numbers = #tpu.dot_dimension_numbers<[1], [0], [0], [1], [0, 0, 1, 1], [], []>} : vector<16x32xf32>, vector<32x32xf32>, vector<16x32xf32> -> vector<16x32xf32>
    %139 = arith.addf %136, %138 : vector<16x32xf32>
    %c0_32 = arith.constant 0 : index
    %c0_33 = arith.constant 0 : index
    %140 = vector.load %arg12[%c0_32, %c0_33] : memref<1x32xf32, #tpu.memory_space<vmem>>, vector<1x32xf32>
    %141 = vector.broadcast %140 : vector<1x32xf32> to vector<16x32xf32>
    %142 = arith.addf %139, %141 : vector<16x32xf32>
    %c0_34 = arith.constant 0 : index
    %c0_35 = arith.constant 0 : index
    %143 = vector.load %arg13[%c0_34, %c0_35] : memref<16x32xf32, #tpu.memory_space<vmem>>, vector<16x32xf32>
    tpu.vector_store %arg13[%c0_34, %c0_35], %142 {strides = array<i32>} : memref<16x32xf32, #tpu.memory_space<vmem>>, vector<16x32xf32>,
    return
  }
  func.func @transform_0(%arg0: i32) -> (i32, i32) {
    %c0_i32 = arith.constant 0 : i32
    %c0_i32_0 = arith.constant 0 : i32
    return %arg0, %c0_i32 : i32, i32
  }
  func.func @transform_1(%arg0: i32) -> (i32, i32) {
    %c0_i32 = arith.constant 0 : i32
    %c0_i32_0 = arith.constant 0 : i32
    return %arg0, %c0_i32 : i32, i32
  }
  func.func @transform_2(%arg0: i32) -> (i32, i32) {
    %c0_i32 = arith.constant 0 : i32
    %c0_i32_0 = arith.constant 0 : i32
    return %arg0, %c0_i32 : i32, i32
  }
  func.func @transform_3(%arg0: i32) -> (i32, i32) {
    %c0_i32 = arith.constant 0 : i32
    %c0_i32_0 = arith.constant 0 : i32
    %c0_i32_1 = arith.constant 0 : i32
    return %c0_i32, %c0_i32_0 : i32, i32
  }
  func.func @transform_4(%arg0: i32) -> (i32, i32) {
    %c0_i32 = arith.constant 0 : i32
    %c0_i32_0 = arith.constant 0 : i32
    %c0_i32_1 = arith.constant 0 : i32
    return %c0_i32, %c0_i32_0 : i32, i32
  }
  func.func @transform_5(%arg0: i32) -> (i32, i32) {
    %c0_i32 = arith.constant 0 : i32
    %c0_i32_0 = arith.constant 0 : i32
    %c0_i32_1 = arith.constant 0 : i32
    return %c0_i32, %c0_i32_0 : i32, i32
  }
  func.func @transform_6(%arg0: i32) -> (i32, i32) {
    %c0_i32 = arith.constant 0 : i32
    %c0_i32_0 = arith.constant 0 : i32
    %c0_i32_1 = arith.constant 0 : i32
    return %c0_i32, %c0_i32_0 : i32, i32
  }
  func.func @transform_7(%arg0: i32) -> (i32, i32) {
    %c0_i32 = arith.constant 0 : i32
    %c0_i32_0 = arith.constant 0 : i32
    %c0_i32_1 = arith.constant 0 : i32
    return %c0_i32, %c0_i32_0 : i32, i32
  }
  func.func @transform_8(%arg0: i32) -> (i32, i32) {
    %c0_i32 = arith.constant 0 : i32
    %c0_i32_0 = arith.constant 0 : i32
    %c0_i32_1 = arith.constant 0 : i32
    return %c0_i32, %c0_i32_0 : i32, i32
  }
  func.func @transform_9(%arg0: i32) -> (i32, i32) {
    %c0_i32 = arith.constant 0 : i32
    %c0_i32_0 = arith.constant 0 : i32
    %c0_i32_1 = arith.constant 0 : i32
    return %c0_i32, %c0_i32_0 : i32, i32
  }
  func.func @transform_10(%arg0: i32) -> (i32, i32) {
    %c0_i32 = arith.constant 0 : i32
    %c0_i32_0 = arith.constant 0 : i32
    %c0_i32_1 = arith.constant 0 : i32
    return %c0_i32, %c0_i32_0 : i32, i32
  }
  func.func @transform_11(%arg0: i32) -> (i32, i32) {
    %c0_i32 = arith.constant 0 : i32
    %c0_i32_0 = arith.constant 0 : i32
    %c0_i32_1 = arith.constant 0 : i32
    return %c0_i32, %c0_i32_0 : i32, i32
  }
  func.func @transform_12(%arg0: i32) -> (i32, i32) {
    %c0_i32 = arith.constant 0 : i32
    %c0_i32_0 = arith.constant 0 : i32
    return %arg0, %c0_i32 : i32, i32
  }
}

</mosaic_0001>

<llo_original>
// kernel: tpu_custom_call.1
$region0: #{tpu_custom_call.1}
  #allocation0 [shape = 'u32[]', space=smem, size = 0x4, offset = 0x4, fixed_abs, tag = 'smem constant byte address 0x4 - core index']
  #allocation1 [shape = 'u32[144,128]{1,0:T(1,128)}', space=vmem, size = 0x12000, scoped, tag = 'internal scratch']
  %s0 = inlined_call_operand.vmem [shape: f32[16,32], index: 0, kind: input, shape index: {}]
  %s1 = inlined_call_operand.vmem [shape: f32[16,192], index: 1, kind: input, shape index: {}]
  %s2 = inlined_call_operand.vmem [shape: f32[16,16], index: 2, kind: input, shape index: {}]
  %s3 = inlined_call_operand.vmem [shape: f32[32,96], index: 3, kind: input, shape index: {}]
  %s4 = inlined_call_operand.vmem [shape: f32[1,96], index: 4, kind: input, shape index: {}]
  %s5 = inlined_call_operand.vmem [shape: f32[512,32], index: 5, kind: input, shape index: {}]
  %s6 = inlined_call_operand.vmem [shape: f32[1,32], index: 6, kind: input, shape index: {}]
  %s7 = inlined_call_operand.vmem [shape: f32[32,32], index: 7, kind: input, shape index: {}]
  %s8 = inlined_call_operand.vmem [shape: f32[1,32], index: 8, kind: input, shape index: {}]
  %s9 = inlined_call_operand.vmem [shape: f32[32,32], index: 9, kind: input, shape index: {}]
  %s10 = inlined_call_operand.vmem [shape: f32[32,32], index: 10, kind: input, shape index: {}]
  %s11 = inlined_call_operand.vmem [shape: f32[1,32], index: 11, kind: input, shape index: {}]
  %s12 = inlined_call_operand.hbm [shape: f32[16,32], index: 12, kind: output, shape index: {}]
  %s13 = sld [smem:[#allocation0]]
  $region58: #{tpu_custom_call.1} parent=0
    _
  %s15 = ssub.s32 1, %s13
  %s16 = scalar_select 0, %s15, %s13
  $region1: #{tpu_custom_call.1} parent=0
    #allocation2 [shape = 'u8[8192]{0}', space=vmem, size = 0x2000, scoped, tag = 'output window, operand 0, single buffered']
    #allocation3 [shape = 's32[1]{0}', space=sflag, size = 0x4, scoped, tag = 'scoped memory for tpu_custom_call.1']
    %17 = vsyncpa [#allocation3], 0
    // Predicated region
    $region2: #{tpu_custom_call.1} parent=1 // pred_check
      _
    $region3: #{tpu_custom_call.1} parent=1 // pred_check_branch
      %19 = sbr.rel (0) target = $region5
    $region4: #{tpu_custom_call.1} parent=1 // pred_region
      _
    $region5: #{tpu_custom_call.1} parent=1 // pred_fallthru
      _
    // Predicated region
    $region6: #{tpu_custom_call.1} parent=1 // pred_check
      _
    $region7: #{tpu_custom_call.1} parent=1 // pred_check_branch
      %21 = sbr.rel (0) target = $region9
    $region8: #{tpu_custom_call.1} parent=1 // pred_region
      _
    $region9: #{tpu_custom_call.1} parent=1 // pred_fallthru
      _
    // Predicated region
    $region10: #{tpu_custom_call.1} parent=1 // pred_check
      _
    $region11: #{tpu_custom_call.1} parent=1 // pred_check_branch
      %23 = sbr.rel (0) target = $region13
    $region12: #{tpu_custom_call.1} parent=1 // pred_region
      _
    $region13: #{tpu_custom_call.1} parent=1 // pred_fallthru
      _
    // Predicated region
    $region14: #{tpu_custom_call.1} parent=1 // pred_check
      _
    $region15: #{tpu_custom_call.1} parent=1 // pred_check_branch
      %25 = sbr.rel (0) target = $region17
    $region16: #{tpu_custom_call.1} parent=1 // pred_region
      _
    $region17: #{tpu_custom_call.1} parent=1 // pred_fallthru
      _
    // Predicated region
    $region18: #{tpu_custom_call.1} parent=1 // pred_check
      _
    $region19: #{tpu_custom_call.1} parent=1 // pred_check_branch
      %27 = sbr.rel (0) target = $region21
    $region20: #{tpu_custom_call.1} parent=1 // pred_region
      _
    $region21: #{tpu_custom_call.1} parent=1 // pred_fallthru
      _
    // Predicated region
    $region22: #{tpu_custom_call.1} parent=1 // pred_check
      _
    $region23: #{tpu_custom_call.1} parent=1 // pred_check_branch
      %29 = sbr.rel (0) target = $region25
    $region24: #{tpu_custom_call.1} parent=1 // pred_region
      _
    $region25: #{tpu_custom_call.1} parent=1 // pred_fallthru
      _
    // Predicated region
    $region26: #{tpu_custom_call.1} parent=1 // pred_check
      _
    $region27: #{tpu_custom_call.1} parent=1 // pred_check_branch
      %31 = sbr.rel (0) target = $region29
    $region28: #{tpu_custom_call.1} parent=1 // pred_region
      _
    $region29: #{tpu_custom_call.1} parent=1 // pred_fallthru
      _
    // Predicated region
    $region30: #{tpu_custom_call.1} parent=1 // pred_check
      _
    $region31: #{tpu_custom_call.1} parent=1 // pred_check_branch
      %33 = sbr.rel (0) target = $region33
    $region32: #{tpu_custom_call.1} parent=1 // pred_region
      _
    $region33: #{tpu_custom_call.1} parent=1 // pred_fallthru
      _
    // Predicated region
    $region34: #{tpu_custom_call.1} parent=1 // pred_check
      _
    $region35: #{tpu_custom_call.1} parent=1 // pred_check_branch
      %35 = sbr.rel (0) target = $region37
    $region36: #{tpu_custom_call.1} parent=1 // pred_region
      _
    $region37: #{tpu_custom_call.1} parent=1 // pred_fallthru
      _
    // Predicated region
    $region38: #{tpu_custom_call.1} parent=1 // pred_check
      _
    $region39: #{tpu_custom_call.1} parent=1 // pred_check_branch
      %37 = sbr.rel (0) target = $region41
    $region40: #{tpu_custom_call.1} parent=1 // pred_region
      _
    $region41: #{tpu_custom_call.1} parent=1 // pred_fallthru
      _
    // Predicated region
    $region42: #{tpu_custom_call.1} parent=1 // pred_check
      _
    $region43: #{tpu_custom_call.1} parent=1 // pred_check_branch
      %39 = sbr.rel (0) target = $region45
    $region44: #{tpu_custom_call.1} parent=1 // pred_region
      _
    $region45: #{tpu_custom_call.1} parent=1 // pred_fallthru
      _
    // Predicated region
    $region46: #{tpu_custom_call.1} parent=1 // pred_check
      _
    $region47: #{tpu_custom_call.1} parent=1 // pred_check_branch
      %41 = sbr.rel (0) target = $region49
    $region48: #{tpu_custom_call.1} parent=1 // pred_region
      _
    $region49: #{tpu_custom_call.1} parent=1 // pred_fallthru
      _
    %v42 = vld [vmem:[%s0] sm:$0xff]
    %v43 = vld [vmem:[%s0 + $0x8] sm:$0xff]
    %v44 = vld [vmem:[%s1] sm:$0xff]
    %v45 = vld [vmem:[%s1 + $0x8] sm:$0xff]
    %v46 = vld [vmem:[%s1 + $0x10] sm:$0xff]
    %v47 = vld [vmem:[%s1 + $0x18] sm:$0xff]
    %v48 = vld [vmem:[%s2] sm:$0xff]
    %v49 = vld [vmem:[%s2 + $0x8] sm:$0xff]
    %v50 = vld [vmem:[%s3] sm:$0xff]
    %v51 = vld [vmem:[%s3 + $0x8] sm:$0xff]
    %v52 = vld [vmem:[%s3 + $0x10] sm:$0xff]
    %v53 = vld [vmem:[%s3 + $0x18] sm:$0xff]
    %v54 = vld [vmem:[%s4] sm:$0x1]
    %v56 = vlaneseq
    %v57 = vshrl.u32 %v56, 7
    %v58 = vsub.s32 0, %v57
    %v59 = vrot.slane %v54, %v58
    %vm61 = vcmask 261120
    %v63 = vsel %vm61, %v42, 0
    %v66 = vsel %vm61, %v43, 0
    %68 = vmatprep.subr.mxu0 0.0
    %69 = vmatpush1.msra.mxu0 0.0
    %70 = vmatprep.subr.mxu0 0.0
    %71 = vmatpush1.msra.mxu0 0.0
    %72 = vmatprep.subr.mxu0 0.0
    %73 = vmatpush1.msra.mxu0 0.0
    %74 = vmatprep.subr.mxu0 0.0
    %75 = vmatpush1.msra.mxu0 0.0
    %76 = vmatprep.subr.mxu0 0.0
    %77 = vmatpush1.msra.mxu0 0.0
    %78 = vmatprep.subr.mxu0 0.0
    %79 = vmatpush1.msra.mxu0 0.0
    %80 = vmatprep.subr.mxu0 0.0
    %81 = vmatpush1.msra.mxu0 0.0
    %82 = vmatprep.subr.mxu0 0.0
    %83 = vmatpush1.msra.mxu0 0.0
    %84 = vmatprep.subr.mxu0 0.0
    %85 = vmatpush1.msra.mxu0 0.0
    %86 = vmatprep.subr.mxu0 0.0
    %87 = vmatpush1.msra.mxu0 0.0
    %88 = vmatprep.subr.mxu0 0.0
    %89 = vmatpush1.msra.mxu0 0.0
    %90 = vmatprep.subr.mxu0 0.0
    %91 = vmatpush1.msra.mxu0 0.0
    %92 = vmatprep.subr.mxu0 0.0
    %93 = vmatpush1.msra.mxu0 %v53
    %94 = vmatprep.subr.mxu0 0.0
    %95 = vmatpush1.msra.mxu0 %v52
    %96 = vmatprep.subr.mxu0 0.0
    %97 = vmatpush1.msra.mxu0 %v51
    %98 = vmatprep.subr.mxu0 0.0
    %99 = vmatpush1.msra.mxu0 %v50
    %100 = vmatprep.subr.mxu0 0.0
    %101 = vmatpush2.msra.mxu0 0.0
    %102 = vmatprep.subr.mxu0 0.0
    %103 = vmatpush2.msra.mxu0 0.0
    %104 = vmatprep.subr.mxu0 0.0
    %105 = vmatpush2.msra.mxu0 0.0
    %106 = vmatprep.subr.mxu0 0.0
    %107 = vmatpush2.msra.mxu0 0.0
    %108 = vmatprep.subr.mxu0 0.0
    %109 = vmatpush2.msra.mxu0 0.0
    %110 = vmatprep.subr.mxu0 0.0
    %111 = vmatpush2.msra.mxu0 0.0
    %112 = vmatprep.subr.mxu0 0.0
    %113 = vmatpush2.msra.mxu0 0.0
    %114 = vmatprep.subr.mxu0 0.0
    %115 = vmatpush2.msra.mxu0 0.0
    %116 = vmatprep.subr.mxu0 0.0
    %117 = vmatpush2.msra.mxu0 0.0
    %118 = vmatprep.subr.mxu0 0.0
    %119 = vmatpush2.msra.mxu0 0.0
    %120 = vmatprep.subr.mxu0 0.0
    %121 = vmatpush2.msra.mxu0 0.0
    %122 = vmatprep.subr.mxu0 0.0
    %123 = vmatpush2.msra.mxu0 0.0
    %124 = vmatprep.subr.mxu0 0.0
    %125 = vmatpush2.msra.mxu0 0.0
    %126 = vmatprep.subr.mxu0 0.0
    %127 = vmatpush2.msra.mxu0 0.0
    %128 = vmatprep.subr.mxu0 0.0
    %129 = vmatpush2.msra.mxu0 0.0
    %130 = vmatprep.subr.mxu0 0.0
    %131 = vmatpush2.msra.mxu0 0.0
    %132 = vmatprep.mubr.f32.mxu0 0.0
    %133 = vmatmul.mubr.f32.gmra.mxu0 %v63
    %v134 = vpop.f32.mrf.mxu0
    %v135 = vadd.f32 %v59, %v134
    %v136 = vpop.f32.mrf.mxu0
    %137 = vmatprep.mubr.f32.mxu0 0.0
    %138 = vmatmul.mubr.f32.gmra.mxu0 %v66
    %v139 = vpop.f32.mrf.mxu0
    %v140 = vadd.f32 %v59, %v139
    %v141 = vpop.f32.mrf.mxu0
    %142 = vdwg.mxu0
    %144 = vset.pattern.permute.xlu0 0
    %145 = vperm.xlu0 %144, %v48
    %v146 = vpop.permute.xlu0 %145
    %149 = vset.pattern.permute.xlu0 0
    %150 = vperm.xlu0 %149, %v49
    %v151 = vpop.permute.xlu0 %150
    %153 = vset.pattern.permute.xlu0 1
    %154 = vperm.xlu0 %153, %v48
    %v155 = vpop.permute.xlu0 %154
    %157 = vset.pattern.permute.xlu0 1
    %158 = vperm.xlu0 %157, %v49
    %v159 = vpop.permute.xlu0 %158
    %161 = vset.pattern.permute.xlu0 2
    %162 = vperm.xlu0 %161, %v48
    %v163 = vpop.permute.xlu0 %162
    %165 = vset.pattern.permute.xlu0 2
    %166 = vperm.xlu0 %165, %v49
    %v167 = vpop.permute.xlu0 %166
    %169 = vset.pattern.permute.xlu0 3
    %170 = vperm.xlu0 %169, %v48
    %v171 = vpop.permute.xlu0 %170
    %173 = vset.pattern.permute.xlu0 3
    %174 = vperm.xlu0 %173, %v49
    %v175 = vpop.permute.xlu0 %174
    %177 = vset.pattern.permute.xlu0 4
    %178 = vperm.xlu0 %177, %v48
    %v179 = vpop.permute.xlu0 %178
    %181 = vset.pattern.permute.xlu0 4
    %182 = vperm.xlu0 %181, %v49
    %v183 = vpop.permute.xlu0 %182
    %185 = vset.pattern.permute.xlu0 5
    %186 = vperm.xlu0 %185, %v48
    %v187 = vpop.permute.xlu0 %186
    %189 = vset.pattern.permute.xlu0 5
    %190 = vperm.xlu0 %189, %v49
    %v191 = vpop.permute.xlu0 %190
    %193 = vset.pattern.permute.xlu0 6
    %194 = vperm.xlu0 %193, %v48
    %v195 = vpop.permute.xlu0 %194
    %197 = vset.pattern.permute.xlu0 6
    %198 = vperm.xlu0 %197, %v49
    %v199 = vpop.permute.xlu0 %198
    %201 = vset.pattern.permute.xlu0 7
    %202 = vperm.xlu0 %201, %v48
    %v203 = vpop.permute.xlu0 %202
    %205 = vset.pattern.permute.xlu0 7
    %206 = vperm.xlu0 %205, %v49
    %v207 = vpop.permute.xlu0 %206
    %209 = vset.pattern.permute.xlu0 8
    %210 = vperm.xlu0 %209, %v48
    %v211 = vpop.permute.xlu0 %210
    %213 = vset.pattern.permute.xlu0 8
    %214 = vperm.xlu0 %213, %v49
    %v215 = vpop.permute.xlu0 %214
    %217 = vset.pattern.permute.xlu0 9
    %218 = vperm.xlu0 %217, %v48
    %v219 = vpop.permute.xlu0 %218
    %221 = vset.pattern.permute.xlu0 9
    %222 = vperm.xlu0 %221, %v49
    %v223 = vpop.permute.xlu0 %222
    %225 = vset.pattern.permute.xlu0 10
    %226 = vperm.xlu0 %225, %v48
    %v227 = vpop.permute.xlu0 %226
    %229 = vset.pattern.permute.xlu0 10
    %230 = vperm.xlu0 %229, %v49
    %v231 = vpop.permute.xlu0 %230
    %233 = vset.pattern.permute.xlu0 11
    %234 = vperm.xlu0 %233, %v48
    %v235 = vpop.permute.xlu0 %234
    %237 = vset.pattern.permute.xlu0 11
    %238 = vperm.xlu0 %237, %v49
    %v239 = vpop.permute.xlu0 %238
    %v241 = vmul.f32 %v146, %v135
    %v242 = vmul.f32 %v151, %v140
    %v243 = vmul.f32 %v155, %v135
    %v244 = vmul.f32 %v159, %v140
    %247 = vrot.lane.b32.xlu0 %v243, 96
    %v248 = vpop.permute.xlu0 %247
    %249 = vrot.lane.b32.xlu0 %v244, 96
    %v250 = vpop.permute.xlu0 %249
    %v253 = vadd.f32 %v241, %v248
    %v254 = vadd.f32 %v242, %v250
    %v255 = vmul.f32 %v163, %v135
    %v256 = vmul.f32 %v167, %v140
    %259 = vrot.lane.b32.xlu0 %v255, 64
    %v260 = vpop.permute.xlu0 %259
    %261 = vrot.lane.b32.xlu0 %v256, 64
    %v262 = vpop.permute.xlu0 %261
    %v265 = vadd.f32 %v253, %v260
    %v266 = vadd.f32 %v254, %v262
    %v267 = vmul.f32 %v146, %v44
    %v268 = vmul.f32 %v151, %v46
    %v269 = vmul.f32 %v155, %v44
    %v270 = vmul.f32 %v159, %v46
    %273 = vrot.lane.b32.xlu0 %v269, 96
    %v274 = vpop.permute.xlu0 %273
    %275 = vrot.lane.b32.xlu0 %v270, 96
    %v276 = vpop.permute.xlu0 %275
    %v279 = vadd.f32 %v267, %v274
    %v280 = vadd.f32 %v268, %v276
    %v281 = vmul.f32 %v163, %v44
    %v282 = vmul.f32 %v167, %v46
    %285 = vrot.lane.b32.xlu0 %v281, 64
    %v286 = vpop.permute.xlu0 %285
    %287 = vrot.lane.b32.xlu0 %v282, 64
    %v288 = vpop.permute.xlu0 %287
    %v291 = vadd.f32 %v279, %v286
    %v292 = vadd.f32 %v280, %v288
    %v293 = vadd.f32 %v265, %v219
    %v294 = vadd.f32 %v266, %v223
    %v295 = vadd.f32 %v291, %v219
    %v296 = vadd.f32 %v292, %v223
    %299 = vrot.lane.b32.xlu0 %v291, 96
    %v300 = vpop.permute.xlu0 %299
    %301 = vrot.lane.b32.xlu0 %v292, 96
    %v302 = vpop.permute.xlu0 %301
    %v305 = vmul.f32 %v44, %v300
    %v306 = vmul.f32 %v46, %v302
    %v307 = vadd.f32 %v305, 0.0
    %v308 = vadd.f32 %v306, 0.0
    %v309 = vmul.f32 %v171, %v135
    %v310 = vmul.f32 %v175, %v140
    %v311 = vmul.f32 %v179, %v135
    %v312 = vmul.f32 %v183, %v140
    %315 = vrot.lane.b32.xlu0 %v311, 96
    %v316 = vpop.permute.xlu0 %315
    %317 = vrot.lane.b32.xlu0 %v312, 96
    %v318 = vpop.permute.xlu0 %317
    %v321 = vadd.f32 %v309, %v316
    %v322 = vadd.f32 %v310, %v318
    %v323 = vmul.f32 %v187, %v135
    %v324 = vmul.f32 %v191, %v140
    %327 = vrot.lane.b32.xlu0 %v323, 64
    %v328 = vpop.permute.xlu0 %327
    %329 = vrot.lane.b32.xlu0 %v324, 64
    %v330 = vpop.permute.xlu0 %329
    %v333 = vadd.f32 %v321, %v328
    %v334 = vadd.f32 %v322, %v330
    %v335 = vmul.f32 %v171, %v44
    %v336 = vmul.f32 %v175, %v46
    %v337 = vmul.f32 %v179, %v44
    %v338 = vmul.f32 %v183, %v46
    %341 = vrot.lane.b32.xlu0 %v337, 96
    %v342 = vpop.permute.xlu0 %341
    %343 = vrot.lane.b32.xlu0 %v338, 96
    %v344 = vpop.permute.xlu0 %343
    %v347 = vadd.f32 %v335, %v342
    %v348 = vadd.f32 %v336, %v344
    %v349 = vmul.f32 %v187, %v44
    %v350 = vmul.f32 %v191, %v46
    %353 = vrot.lane.b32.xlu0 %v349, 64
    %v354 = vpop.permute.xlu0 %353
    %355 = vrot.lane.b32.xlu0 %v350, 64
    %v356 = vpop.permute.xlu0 %355
    %v359 = vadd.f32 %v347, %v354
    %v360 = vadd.f32 %v348, %v356
    %v361 = vadd.f32 %v333, %v227
    %v362 = vadd.f32 %v334, %v231
    %v363 = vadd.f32 %v359, %v227
    %v364 = vadd.f32 %v360, %v231
    %v365 = vmul.f32 %v45, %v359
    %v366 = vmul.f32 %v47, %v360
    %369 = vrot.lane.b32.xlu0 %v365, 96
    %v370 = vpop.permute.xlu0 %369
    %371 = vrot.lane.b32.xlu0 %v366, 96
    %v372 = vpop.permute.xlu0 %371
    %v375 = vadd.f32 %v307, %v370
    %v376 = vadd.f32 %v308, %v372
    %v377 = vmul.f32 %v195, %v135
    %v378 = vmul.f32 %v199, %v140
    %v379 = vmul.f32 %v203, %v135
    %v380 = vmul.f32 %v207, %v140
    %383 = vrot.lane.b32.xlu0 %v379, 96
    %v384 = vpop.permute.xlu0 %383
    %385 = vrot.lane.b32.xlu0 %v380, 96
    %v386 = vpop.permute.xlu0 %385
    %v389 = vadd.f32 %v377, %v384
    %v390 = vadd.f32 %v378, %v386
    %v391 = vmul.f32 %v211, %v135
    %v392 = vmul.f32 %v215, %v140
    %395 = vrot.lane.b32.xlu0 %v391, 64
    %v396 = vpop.permute.xlu0 %395
    %397 = vrot.lane.b32.xlu0 %v392, 64
    %v398 = vpop.permute.xlu0 %397
    %v401 = vadd.f32 %v389, %v396
    %v402 = vadd.f32 %v390, %v398
    %v403 = vmul.f32 %v195, %v44
    %v404 = vmul.f32 %v199, %v46
    %v405 = vmul.f32 %v203, %v44
    %v406 = vmul.f32 %v207, %v46
    %409 = vrot.lane.b32.xlu0 %v405, 96
    %v410 = vpop.permute.xlu0 %409
    %411 = vrot.lane.b32.xlu0 %v406, 96
    %v412 = vpop.permute.xlu0 %411
    %v415 = vadd.f32 %v403, %v410
    %v416 = vadd.f32 %v404, %v412
    %v417 = vmul.f32 %v211, %v44
    %v418 = vmul.f32 %v215, %v46
    %421 = vrot.lane.b32.xlu0 %v417, 64
    %v422 = vpop.permute.xlu0 %421
    %423 = vrot.lane.b32.xlu0 %v418, 64
    %v424 = vpop.permute.xlu0 %423
    %v427 = vadd.f32 %v415, %v422
    %v428 = vadd.f32 %v416, %v424
    %v429 = vadd.f32 %v401, %v235
    %v430 = vadd.f32 %v402, %v239
    %v431 = vadd.f32 %v427, %v235
    %v432 = vadd.f32 %v428, %v239
    %435 = vrot.lane.b32.xlu0 %v427, 32
    %v436 = vpop.permute.xlu0 %435
    %437 = vrot.lane.b32.xlu0 %v428, 32
    %v438 = vpop.permute.xlu0 %437
    %v441 = vmul.f32 %v45, %v436
    %v442 = vmul.f32 %v47, %v438
    %445 = vrot.lane.b32.xlu0 %v441, 64
    %v446 = vpop.permute.xlu0 %445
    %447 = vrot.lane.b32.xlu0 %v442, 64
    %v448 = vpop.permute.xlu0 %447
    %v451 = vadd.f32 %v375, %v446
    %v452 = vadd.f32 %v376, %v448
    %v453 = vmul.f32 %v48, %v48
    %v454 = vmul.f32 %v49, %v49
    %457 = vrot.lane.b32.xlu0 %v453, 127
    %v458 = vpop.permute.xlu0 %457
    %459 = vrot.lane.b32.xlu0 %v454, 127
    %v460 = vpop.permute.xlu0 %459
    %v463 = vadd.f32 %v453, %v458
    %v464 = vadd.f32 %v454, %v460
    %465 = vrot.lane.b32.xlu0 %v453, 126
    %v466 = vpop.permute.xlu0 %465
    %467 = vrot.lane.b32.xlu0 %v454, 126
    %v468 = vpop.permute.xlu0 %467
    %v471 = vadd.f32 %v463, %v466
    %v472 = vadd.f32 %v464, %v468
    %v473 = vrsqrt.pop %v471
    %v474 = vmul.f32 %v471, %v473
    %vm475 = vcmp.eq.f32.partialorder %v471, inf
    %v476 = vsel %vm475, %v471, %v474
    %vm477 = vcmp.eq.f32.partialorder %v471, 0.0
    %v478 = vand.u32 %v471, 2147483648
    %v479 = vsel %vm477, %v478, %v476
    %v480 = vrsqrt.pop %v472
    %v481 = vmul.f32 %v472, %v480
    %vm482 = vcmp.eq.f32.partialorder %v472, inf
    %v483 = vsel %vm482, %v472, %v481
    %vm484 = vcmp.eq.f32.partialorder %v472, 0.0
    %v485 = vand.u32 %v472, 2147483648
    %v486 = vsel %vm484, %v485, %v483
    %v487 = vlaneseq
    %v488 = vand.u32 %v487, 127
    %v489 = vcvt.s32.f32 %v488
    %v490 = vmul.f32 %v489, 3.3333333
    %492 = vset.pattern.permute.xlu0 9
    %493 = vperm.xlu0 %492, %v479
    %v494 = vpop.permute.xlu0 %493
    %497 = vset.pattern.permute.xlu0 9
    %498 = vperm.xlu0 %497, %v486
    %v499 = vpop.permute.xlu0 %498
    %v501 = vsub.f32 %v494, %v490
    %v502 = vsub.f32 %v499, %v490
    %v503 = vmul.f32 %v501, 0.32
    %v504 = vmul.f32 %v502, 0.32
    %v505 = vsub.f32 0.0, %v503
    %v506 = vsub.f32 0.0, %v504
    %v507 = vmul.f32 %v505, %v503
    %v508 = vmul.f32 %v506, %v504
    %v509 = vmul.f32 %v507, 1.442695
    %v510 = vpow.pop %v509
    %v511 = vmul.f32 %v508, 1.442695
    %v512 = vpow.pop %v511
    %515 = vrot.lane.b32.xlu0 %v44, 96
    %v516 = vpop.permute.xlu0 %515
    %517 = vrot.lane.b32.xlu0 %v46, 96
    %v518 = vpop.permute.xlu0 %517
    %523 = vrot.lane.b32.xlu0 %v293, 64
    %v524 = vpop.permute.xlu0 %523
    %525 = vrot.lane.b32.xlu0 %v294, 64
    %v526 = vpop.permute.xlu0 %525
    %531 = vrot.lane.b32.xlu0 %v361, 96
    %v532 = vpop.permute.xlu0 %531
    %533 = vrot.lane.b32.xlu0 %v362, 96
    %v534 = vpop.permute.xlu0 %533
    %539 = vrot.lane.b32.xlu0 %v295, 32
    %v540 = vpop.permute.xlu0 %539
    %541 = vrot.lane.b32.xlu0 %v296, 32
    %v542 = vpop.permute.xlu0 %541
    %547 = vrot.lane.b32.xlu0 %v363, 64
    %v548 = vpop.permute.xlu0 %547
    %549 = vrot.lane.b32.xlu0 %v364, 64
    %v550 = vpop.permute.xlu0 %549
    %555 = vrot.lane.b32.xlu0 %v431, 96
    %v556 = vpop.permute.xlu0 %555
    %557 = vrot.lane.b32.xlu0 %v432, 96
    %v558 = vpop.permute.xlu0 %557
    %563 = vrot.lane.b32.xlu0 %v510, 9
    %v564 = vpop.permute.xlu0 %563
    %565 = vrot.lane.b32.xlu0 %v512, 9
    %v566 = vpop.permute.xlu0 %565
    %571 = vrot.lane.b32.xlu0 %v451, 57
    %v572 = vpop.permute.xlu0 %571
    %573 = vrot.lane.b32.xlu0 %v452, 57
    %v574 = vpop.permute.xlu0 %573
    %vm577 = vcmask 785408
    %v578 = vsel %vm577, %v135, %v516
    %v579 = vsel %vm577, %v140, %v518
    %vm580 = vcmask 523264
    %v581 = vsel %vm580, %v516, %v524
    %v582 = vsel %vm580, %v518, %v526
    %v583 = vsel %vm577, %v581, %v532
    %v584 = vsel %vm577, %v582, %v534
    %v585 = vsel %vm61, %v429, %v540
    %v586 = vsel %vm61, %v430, %v542
    %v587 = vsel %vm580, %v585, %v548
    %v588 = vsel %vm580, %v586, %v550
    %v589 = vsel %vm577, %v587, %v556
    %v590 = vsel %vm577, %v588, %v558
    %vm591 = vcmask 72704
    %v592 = vsel %vm591, %v48, %v564
    %v593 = vsel %vm591, %v49, %v566
    %vm594 = vcmask 203776
    %v595 = vsel %vm594, %v592, %v572
    %v596 = vsel %vm594, %v593, %v574
    %vm597 = vcmask 465920
    %v598 = vsel %vm597, %v595, 0.0
    %v599 = vsel %vm597, %v596, 0.0
    %v600 = vld [vmem:[%s5] sm:$0xff]
    %v601 = vld [vmem:[%s5 + $0x8] sm:$0xff]
    %v602 = vld [vmem:[%s5 + $0x10] sm:$0xff]
    %v603 = vld [vmem:[%s5 + $0x18] sm:$0xff]
    %v604 = vld [vmem:[%s5 + $0x20] sm:$0xff]
    %v605 = vld [vmem:[%s5 + $0x28] sm:$0xff]
    %v606 = vld [vmem:[%s5 + $0x30] sm:$0xff]
    %v607 = vld [vmem:[%s5 + $0x38] sm:$0xff]
    %v608 = vld [vmem:[%s5 + $0x40] sm:$0xff]
    %v609 = vld [vmem:[%s5 + $0x48] sm:$0xff]
    %v610 = vld [vmem:[%s5 + $0x50] sm:$0xff]
    %v611 = vld [vmem:[%s5 + $0x58] sm:$0xff]
    %v612 = vld [vmem:[%s5 + $0x60] sm:$0xff]
    %v613 = vld [vmem:[%s5 + $0x68] sm:$0xff]
    %v614 = vld [vmem:[%s5 + $0x70] sm:$0xff]
    %v615 = vld [vmem:[%s5 + $0x78] sm:$0xff]
    %v616 = vld [vmem:[%s5 + $0x80] sm:$0xff]
    %v617 = vld [vmem:[%s5 + $0x88] sm:$0xff]
    %v618 = vld [vmem:[%s5 + $0x90] sm:$0xff]
    %v619 = vld [vmem:[%s5 + $0x98] sm:$0xff]
    %v620 = vld [vmem:[%s5 + $0xa0] sm:$0xff]
    %v621 = vld [vmem:[%s5 + $0xa8] sm:$0xff]
    %v622 = vld [vmem:[%s5 + $0xb0] sm:$0xff]
    %v623 = vld [vmem:[%s5 + $0xb8] sm:$0xff]
    %v624 = vld [vmem:[%s5 + $0xc0] sm:$0xff]
    %v625 = vld [vmem:[%s5 + $0xc8] sm:$0xff]
    %v626 = vld [vmem:[%s5 + $0xd0] sm:$0xff]
    %v627 = vld [vmem:[%s5 + $0xd8] sm:$0xff]
    %v628 = vld [vmem:[%s5 + $0xe0] sm:$0xff]
    %v629 = vld [vmem:[%s5 + $0xe8] sm:$0xff]
    %v630 = vld [vmem:[%s5 + $0xf0] sm:$0xff]
    %v631 = vld [vmem:[%s5 + $0xf8] sm:$0xff]
    %v632 = vld [vmem:[%s5 + $0x100] sm:$0xff]
    %v633 = vld [vmem:[%s5 + $0x108] sm:$0xff]
    %v634 = vld [vmem:[%s5 + $0x110] sm:$0xff]
    %v635 = vld [vmem:[%s5 + $0x118] sm:$0xff]
    %v636 = vld [vmem:[%s5 + $0x120] sm:$0xff]
    %v637 = vld [vmem:[%s5 + $0x128] sm:$0xff]
    %v638 = vld [vmem:[%s5 + $0x130] sm:$0xff]
    %v639 = vld [vmem:[%s5 + $0x138] sm:$0xff]
    %v640 = vld [vmem:[%s5 + $0x140] sm:$0xff]
    %v641 = vld [vmem:[%s5 + $0x148] sm:$0xff]
    %v642 = vld [vmem:[%s5 + $0x150] sm:$0xff]
    %v643 = vld [vmem:[%s5 + $0x158] sm:$0xff]
    %v644 = vld [vmem:[%s5 + $0x160] sm:$0xff]
    %v645 = vld [vmem:[%s5 + $0x168] sm:$0xff]
    %v646 = vld [vmem:[%s5 + $0x170] sm:$0xff]
    %v647 = vld [vmem:[%s5 + $0x178] sm:$0xff]
    %v648 = vld [vmem:[%s5 + $0x180] sm:$0xff]
    %v649 = vld [vmem:[%s5 + $0x188] sm:$0xff]
    %v650 = vld [vmem:[%s5 + $0x190] sm:$0xff]
    %v651 = vld [vmem:[%s5 + $0x198] sm:$0xff]
    %v652 = vld [vmem:[%s5 + $0x1a0] sm:$0xff]
    %v653 = vld [vmem:[%s5 + $0x1a8] sm:$0xff]
    %v654 = vld [vmem:[%s5 + $0x1b0] sm:$0xff]
    %v655 = vld [vmem:[%s5 + $0x1b8] sm:$0xff]
    %v656 = vld [vmem:[%s5 + $0x1c0] sm:$0xff]
    %v657 = vld [vmem:[%s5 + $0x1c8] sm:$0xff]
    %v658 = vld [vmem:[%s5 + $0x1d0] sm:$0xff]
    %v659 = vld [vmem:[%s5 + $0x1d8] sm:$0xff]
    %v660 = vld [vmem:[%s5 + $0x1e0] sm:$0xff]
    %v661 = vld [vmem:[%s5 + $0x1e8] sm:$0xff]
    %v662 = vld [vmem:[%s5 + $0x1f0] sm:$0xff]
    %v663 = vld [vmem:[%s5 + $0x1f8] sm:$0xff]
    %v664 = vld [vmem:[%s6] sm:$0x1]
    %v666 = vlaneseq
    %v667 = vshrl.u32 %v666, 7
    %v668 = vsub.s32 0, %v667
    %v669 = vrot.slane %v664, %v668
    %671 = vmatprep.subr.mxu0 0.0
    %672 = vmatpush1.msra.mxu0 %v615
    %673 = vmatprep.subr.mxu0 0.0
    %674 = vmatpush1.msra.mxu0 %v614
    %675 = vmatprep.subr.mxu0 0.0
    %676 = vmatpush1.msra.mxu0 %v613
    %677 = vmatprep.subr.mxu0 0.0
    %678 = vmatpush1.msra.mxu0 %v612
    %679 = vmatprep.subr.mxu0 0.0
    %680 = vmatpush1.msra.mxu0 %v611
    %681 = vmatprep.subr.mxu0 0.0
    %682 = vmatpush1.msra.mxu0 %v610
    %683 = vmatprep.subr.mxu0 0.0
    %684 = vmatpush1.msra.mxu0 %v609
    %685 = vmatprep.subr.mxu0 0.0
    %686 = vmatpush1.msra.mxu0 %v608
    %687 = vmatprep.subr.mxu0 0.0
    %688 = vmatpush1.msra.mxu0 %v607
    %689 = vmatprep.subr.mxu0 0.0
    %690 = vmatpush1.msra.mxu0 %v606
    %691 = vmatprep.subr.mxu0 0.0
    %692 = vmatpush1.msra.mxu0 %v605
    %693 = vmatprep.subr.mxu0 0.0
    %694 = vmatpush1.msra.mxu0 %v604
    %695 = vmatprep.subr.mxu0 0.0
    %696 = vmatpush1.msra.mxu0 %v603
    %697 = vmatprep.subr.mxu0 0.0
    %698 = vmatpush1.msra.mxu0 %v602
    %699 = vmatprep.subr.mxu0 0.0
    %700 = vmatpush1.msra.mxu0 %v601
    %701 = vmatprep.subr.mxu0 0.0
    %702 = vmatpush1.msra.mxu0 %v600
    %703 = vmatprep.subr.mxu0 0.0
    %704 = vmatpush2.msra.mxu0 %v631
    %705 = vmatprep.subr.mxu0 0.0
    %706 = vmatpush2.msra.mxu0 %v630
    %707 = vmatprep.subr.mxu0 0.0
    %708 = vmatpush2.msra.mxu0 %v629
    %709 = vmatprep.subr.mxu0 0.0
    %710 = vmatpush2.msra.mxu0 %v628
    %711 = vmatprep.subr.mxu0 0.0
    %712 = vmatpush2.msra.mxu0 %v627
    %713 = vmatprep.subr.mxu0 0.0
    %714 = vmatpush2.msra.mxu0 %v626
    %715 = vmatprep.subr.mxu0 0.0
    %716 = vmatpush2.msra.mxu0 %v625
    %717 = vmatprep.subr.mxu0 0.0
    %718 = vmatpush2.msra.mxu0 %v624
    %719 = vmatprep.subr.mxu0 0.0
    %720 = vmatpush2.msra.mxu0 %v623
    %721 = vmatprep.subr.mxu0 0.0
    %722 = vmatpush2.msra.mxu0 %v622
    %723 = vmatprep.subr.mxu0 0.0
    %724 = vmatpush2.msra.mxu0 %v621
    %725 = vmatprep.subr.mxu0 0.0
    %726 = vmatpush2.msra.mxu0 %v620
    %727 = vmatprep.subr.mxu0 0.0
    %728 = vmatpush2.msra.mxu0 %v619
    %729 = vmatprep.subr.mxu0 0.0
    %730 = vmatpush2.msra.mxu0 %v618
    %731 = vmatprep.subr.mxu0 0.0
    %732 = vmatpush2.msra.mxu0 %v617
    %733 = vmatprep.subr.mxu0 0.0
    %734 = vmatpush2.msra.mxu0 %v616
    %735 = vmatprep.mubr.f32.mxu0 %v583
    %736 = vmatmul.mubr.f32.gmra.mxu0 %v578
    %v737 = vpop.f32.mrf.mxu0
    %v738 = vadd.f32 %v669, %v737
    %v739 = vpop.f32.mrf.mxu0
    %740 = vmatprep.mubr.f32.mxu0 %v584
    %741 = vmatmul.mubr.f32.gmra.mxu0 %v579
    %v742 = vpop.f32.mrf.mxu0
    %v743 = vadd.f32 %v669, %v742
    %v744 = vpop.f32.mrf.mxu0
    %745 = vdwg.mxu0
    %746 = vmatprep.subr.mxu0 0.0
    %747 = vmatpush1.msra.mxu0 %v647
    %748 = vmatprep.subr.mxu0 0.0
    %749 = vmatpush1.msra.mxu0 %v646
    %750 = vmatprep.subr.mxu0 0.0
    %751 = vmatpush1.msra.mxu0 %v645
    %752 = vmatprep.subr.mxu0 0.0
    %753 = vmatpush1.msra.mxu0 %v644
    %754 = vmatprep.subr.mxu0 0.0
    %755 = vmatpush1.msra.mxu0 %v643
    %756 = vmatprep.subr.mxu0 0.0
    %757 = vmatpush1.msra.mxu0 %v642
    %758 = vmatprep.subr.mxu0 0.0
    %759 = vmatpush1.msra.mxu0 %v641
    %760 = vmatprep.subr.mxu0 0.0
    %761 = vmatpush1.msra.mxu0 %v640
    %762 = vmatprep.subr.mxu0 0.0
    %763 = vmatpush1.msra.mxu0 %v639
    %764 = vmatprep.subr.mxu0 0.0
    %765 = vmatpush1.msra.mxu0 %v638
    %766 = vmatprep.subr.mxu0 0.0
    %767 = vmatpush1.msra.mxu0 %v637
    %768 = vmatprep.subr.mxu0 0.0
    %769 = vmatpush1.msra.mxu0 %v636
    %770 = vmatprep.subr.mxu0 0.0
    %771 = vmatpush1.msra.mxu0 %v635
    %772 = vmatprep.subr.mxu0 0.0
    %773 = vmatpush1.msra.mxu0 %v634
    %774 = vmatprep.subr.mxu0 0.0
    %775 = vmatpush1.msra.mxu0 %v633
    %776 = vmatprep.subr.mxu0 0.0
    %777 = vmatpush1.msra.mxu0 %v632
    %778 = vmatprep.subr.mxu0 0.0
    %779 = vmatpush2.msra.mxu0 %v663
    %780 = vmatprep.subr.mxu0 0.0
    %781 = vmatpush2.msra.mxu0 %v662
    %782 = vmatprep.subr.mxu0 0.0
    %783 = vmatpush2.msra.mxu0 %v661
    %784 = vmatprep.subr.mxu0 0.0
    %785 = vmatpush2.msra.mxu0 %v660
    %786 = vmatprep.subr.mxu0 0.0
    %787 = vmatpush2.msra.mxu0 %v659
    %788 = vmatprep.subr.mxu0 0.0
    %789 = vmatpush2.msra.mxu0 %v658
    %790 = vmatprep.subr.mxu0 0.0
    %791 = vmatpush2.msra.mxu0 %v657
    %792 = vmatprep.subr.mxu0 0.0
    %793 = vmatpush2.msra.mxu0 %v656
    %794 = vmatprep.subr.mxu0 0.0
    %795 = vmatpush2.msra.mxu0 %v655
    %796 = vmatprep.subr.mxu0 0.0
    %797 = vmatpush2.msra.mxu0 %v654
    %798 = vmatprep.subr.mxu0 0.0
    %799 = vmatpush2.msra.mxu0 %v653
    %800 = vmatprep.subr.mxu0 0.0
    %801 = vmatpush2.msra.mxu0 %v652
    %802 = vmatprep.subr.mxu0 0.0
    %803 = vmatpush2.msra.mxu0 %v651
    %804 = vmatprep.subr.mxu0 0.0
    %805 = vmatpush2.msra.mxu0 %v650
    %806 = vmatprep.subr.mxu0 0.0
    %807 = vmatpush2.msra.mxu0 %v649
    %808 = vmatprep.subr.mxu0 0.0
    %809 = vmatpush2.msra.mxu0 %v648
    %810 = vmatprep.mubr.f32.mxu0 %v598
    %811 = vmatmul.mubr.f32.gmra.mxu0 %v589
    %v812 = vpop.f32.mrf.mxu0
    %v813 = vadd.f32 %v738, %v812
    %v814 = vpop.f32.mrf.mxu0
    %815 = vmatprep.mubr.f32.mxu0 %v599
    %816 = vmatmul.mubr.f32.gmra.mxu0 %v590
    %v817 = vpop.f32.mrf.mxu0
    %v818 = vadd.f32 %v743, %v817
    %v819 = vpop.f32.mrf.mxu0
    %820 = vdwg.mxu0
    %v821 = vmax.f32 %v813, 0.0
    %v822 = vmax.f32 %v818, 0.0
    %v823 = vld [vmem:[%s7] sm:$0xff]
    %v824 = vld [vmem:[%s7 + $0x8] sm:$0xff]
    %v825 = vld [vmem:[%s7 + $0x10] sm:$0xff]
    %v826 = vld [vmem:[%s7 + $0x18] sm:$0xff]
    %v827 = vld [vmem:[%s8] sm:$0x1]
    %v829 = vlaneseq
    %v830 = vshrl.u32 %v829, 7
    %v831 = vsub.s32 0, %v830
    %v832 = vrot.slane %v827, %v831
    %v835 = vsel %vm61, %v821, 0
    %v838 = vsel %vm61, %v822, 0
    %840 = vmatprep.subr.mxu0 0.0
    %841 = vmatpush1.msra.mxu0 0.0
    %842 = vmatprep.subr.mxu0 0.0
    %843 = vmatpush1.msra.mxu0 0.0
    %844 = vmatprep.subr.mxu0 0.0
    %845 = vmatpush1.msra.mxu0 0.0
    %846 = vmatprep.subr.mxu0 0.0
    %847 = vmatpush1.msra.mxu0 0.0
    %848 = vmatprep.subr.mxu0 0.0
    %849 = vmatpush1.msra.mxu0 0.0
    %850 = vmatprep.subr.mxu0 0.0
    %851 = vmatpush1.msra.mxu0 0.0
    %852 = vmatprep.subr.mxu0 0.0
    %853 = vmatpush1.msra.mxu0 0.0
    %854 = vmatprep.subr.mxu0 0.0
    %855 = vmatpush1.msra.mxu0 0.0
    %856 = vmatprep.subr.mxu0 0.0
    %857 = vmatpush1.msra.mxu0 0.0
    %858 = vmatprep.subr.mxu0 0.0
    %859 = vmatpush1.msra.mxu0 0.0
    %860 = vmatprep.subr.mxu0 0.0
    %861 = vmatpush1.msra.mxu0 0.0
    %862 = vmatprep.subr.mxu0 0.0
    %863 = vmatpush1.msra.mxu0 0.0
    %864 = vmatprep.subr.mxu0 0.0
    %865 = vmatpush1.msra.mxu0 %v826
    %866 = vmatprep.subr.mxu0 0.0
    %867 = vmatpush1.msra.mxu0 %v825
    %868 = vmatprep.subr.mxu0 0.0
    %869 = vmatpush1.msra.mxu0 %v824
    %870 = vmatprep.subr.mxu0 0.0
    %871 = vmatpush1.msra.mxu0 %v823
    %872 = vmatprep.subr.mxu0 0.0
    %873 = vmatpush2.msra.mxu0 0.0
    %874 = vmatprep.subr.mxu0 0.0
    %875 = vmatpush2.msra.mxu0 0.0
    %876 = vmatprep.subr.mxu0 0.0
    %877 = vmatpush2.msra.mxu0 0.0
    %878 = vmatprep.subr.mxu0 0.0
    %879 = vmatpush2.msra.mxu0 0.0
    %880 = vmatprep.subr.mxu0 0.0
    %881 = vmatpush2.msra.mxu0 0.0
    %882 = vmatprep.subr.mxu0 0.0
    %883 = vmatpush2.msra.mxu0 0.0
    %884 = vmatprep.subr.mxu0 0.0
    %885 = vmatpush2.msra.mxu0 0.0
    %886 = vmatprep.subr.mxu0 0.0
    %887 = vmatpush2.msra.mxu0 0.0
    %888 = vmatprep.subr.mxu0 0.0
    %889 = vmatpush2.msra.mxu0 0.0
    %890 = vmatprep.subr.mxu0 0.0
    %891 = vmatpush2.msra.mxu0 0.0
    %892 = vmatprep.subr.mxu0 0.0
    %893 = vmatpush2.msra.mxu0 0.0
    %894 = vmatprep.subr.mxu0 0.0
    %895 = vmatpush2.msra.mxu0 0.0
    %896 = vmatprep.subr.mxu0 0.0
    %897 = vmatpush2.msra.mxu0 0.0
    %898 = vmatprep.subr.mxu0 0.0
    %899 = vmatpush2.msra.mxu0 0.0
    %900 = vmatprep.subr.mxu0 0.0
    %901 = vmatpush2.msra.mxu0 0.0
    %902 = vmatprep.subr.mxu0 0.0
    %903 = vmatpush2.msra.mxu0 0.0
    %904 = vmatprep.mubr.f32.mxu0 0.0
    %905 = vmatmul.mubr.f32.gmra.mxu0 %v835
    %v906 = vpop.f32.mrf.mxu0
    %v907 = vadd.f32 %v832, %v906
    %v908 = vpop.f32.mrf.mxu0
    %909 = vmatprep.mubr.f32.mxu0 0.0
    %910 = vmatmul.mubr.f32.gmra.mxu0 %v838
    %v911 = vpop.f32.mrf.mxu0
    %v912 = vadd.f32 %v832, %v911
    %v913 = vpop.f32.mrf.mxu0
    %914 = vdwg.mxu0
    %v915 = vmax.f32 %v907, 0.0
    %v916 = vmax.f32 %v912, 0.0
    %v917 = vld [vmem:[%s10] sm:$0xff]
    %v918 = vld [vmem:[%s10 + $0x8] sm:$0xff]
    %v919 = vld [vmem:[%s10 + $0x10] sm:$0xff]
    %v920 = vld [vmem:[%s10 + $0x18] sm:$0xff]
    %v921 = vld [vmem:[%s9] sm:$0xff]
    %v922 = vld [vmem:[%s9 + $0x8] sm:$0xff]
    %v923 = vld [vmem:[%s9 + $0x10] sm:$0xff]
    %v924 = vld [vmem:[%s9 + $0x18] sm:$0xff]
    %v926 = vsel %vm61, %v915, 0
    %v929 = vsel %vm61, %v916, 0
    %931 = vmatprep.subr.mxu0 0.0
    %932 = vmatpush1.msra.mxu0 0.0
    %933 = vmatprep.subr.mxu0 0.0
    %934 = vmatpush1.msra.mxu0 0.0
    %935 = vmatprep.subr.mxu0 0.0
    %936 = vmatpush1.msra.mxu0 0.0
    %937 = vmatprep.subr.mxu0 0.0
    %938 = vmatpush1.msra.mxu0 0.0
    %939 = vmatprep.subr.mxu0 0.0
    %940 = vmatpush1.msra.mxu0 0.0
    %941 = vmatprep.subr.mxu0 0.0
    %942 = vmatpush1.msra.mxu0 0.0
    %943 = vmatprep.subr.mxu0 0.0
    %944 = vmatpush1.msra.mxu0 0.0
    %945 = vmatprep.subr.mxu0 0.0
    %946 = vmatpush1.msra.mxu0 0.0
    %947 = vmatprep.subr.mxu0 0.0
    %948 = vmatpush1.msra.mxu0 0.0
    %949 = vmatprep.subr.mxu0 0.0
    %950 = vmatpush1.msra.mxu0 0.0
    %951 = vmatprep.subr.mxu0 0.0
    %952 = vmatpush1.msra.mxu0 0.0
    %953 = vmatprep.subr.mxu0 0.0
    %954 = vmatpush1.msra.mxu0 0.0
    %955 = vmatprep.subr.mxu0 0.0
    %956 = vmatpush1.msra.mxu0 %v924
    %957 = vmatprep.subr.mxu0 0.0
    %958 = vmatpush1.msra.mxu0 %v923
    %959 = vmatprep.subr.mxu0 0.0
    %960 = vmatpush1.msra.mxu0 %v922
    %961 = vmatprep.subr.mxu0 0.0
    %962 = vmatpush1.msra.mxu0 %v921
    %963 = vmatprep.subr.mxu0 0.0
    %964 = vmatpush2.msra.mxu0 0.0
    %965 = vmatprep.subr.mxu0 0.0
    %966 = vmatpush2.msra.mxu0 0.0
    %967 = vmatprep.subr.mxu0 0.0
    %968 = vmatpush2.msra.mxu0 0.0
    %969 = vmatprep.subr.mxu0 0.0
    %970 = vmatpush2.msra.mxu0 0.0
    %971 = vmatprep.subr.mxu0 0.0
    %972 = vmatpush2.msra.mxu0 0.0
    %973 = vmatprep.subr.mxu0 0.0
    %974 = vmatpush2.msra.mxu0 0.0
    %975 = vmatprep.subr.mxu0 0.0
    %976 = vmatpush2.msra.mxu0 0.0
    %977 = vmatprep.subr.mxu0 0.0
    %978 = vmatpush2.msra.mxu0 0.0
    %979 = vmatprep.subr.mxu0 0.0
    %980 = vmatpush2.msra.mxu0 0.0
    %981 = vmatprep.subr.mxu0 0.0
    %982 = vmatpush2.msra.mxu0 0.0
    %983 = vmatprep.subr.mxu0 0.0
    %984 = vmatpush2.msra.mxu0 0.0
    %985 = vmatprep.subr.mxu0 0.0
    %986 = vmatpush2.msra.mxu0 0.0
    %987 = vmatprep.subr.mxu0 0.0
    %988 = vmatpush2.msra.mxu0 0.0
    %989 = vmatprep.subr.mxu0 0.0
    %990 = vmatpush2.msra.mxu0 0.0
    %991 = vmatprep.subr.mxu0 0.0
    %992 = vmatpush2.msra.mxu0 0.0
    %993 = vmatprep.subr.mxu0 0.0
    %994 = vmatpush2.msra.mxu0 0.0
    %995 = vmatprep.mubr.f32.mxu0 0.0
    %996 = vmatmul.mubr.f32.gmra.mxu0 %v926
    %v997 = vpop.f32.mrf.mxu0
    %v998 = vadd.f32 0.0, %v997
    %v999 = vpop.f32.mrf.mxu0
    %1000 = vmatprep.mubr.f32.mxu0 0.0
    %1001 = vmatmul.mubr.f32.gmra.mxu0 %v929
    %v1002 = vpop.f32.mrf.mxu0
    %v1003 = vadd.f32 0.0, %v1002
    %v1004 = vpop.f32.mrf.mxu0
    %1005 = vdwg.mxu0
    %1006 = vmatprep.subr.mxu0 0.0
    %1007 = vmatpush1.msra.mxu0 0.0
    %1008 = vmatprep.subr.mxu0 0.0
    %1009 = vmatpush1.msra.mxu0 0.0
    %1010 = vmatprep.subr.mxu0 0.0
    %1011 = vmatpush1.msra.mxu0 0.0
    %1012 = vmatprep.subr.mxu0 0.0
    %1013 = vmatpush1.msra.mxu0 0.0
    %1014 = vmatprep.subr.mxu0 0.0
    %1015 = vmatpush1.msra.mxu0 0.0
    %1016 = vmatprep.subr.mxu0 0.0
    %1017 = vmatpush1.msra.mxu0 0.0
    %1018 = vmatprep.subr.mxu0 0.0
    %1019 = vmatpush1.msra.mxu0 0.0
    %1020 = vmatprep.subr.mxu0 0.0
    %1021 = vmatpush1.msra.mxu0 0.0
    %1022 = vmatprep.subr.mxu0 0.0
    %1023 = vmatpush1.msra.mxu0 0.0
    %1024 = vmatprep.subr.mxu0 0.0
    %1025 = vmatpush1.msra.mxu0 0.0
    %1026 = vmatprep.subr.mxu0 0.0
    %1027 = vmatpush1.msra.mxu0 0.0
    %1028 = vmatprep.subr.mxu0 0.0
    %1029 = vmatpush1.msra.mxu0 0.0
    %1030 = vmatprep.subr.mxu0 0.0
    %1031 = vmatpush1.msra.mxu0 %v920
    %1032 = vmatprep.subr.mxu0 0.0
    %1033 = vmatpush1.msra.mxu0 %v919
    %1034 = vmatprep.subr.mxu0 0.0
    %1035 = vmatpush1.msra.mxu0 %v918
    %1036 = vmatprep.subr.mxu0 0.0
    %1037 = vmatpush1.msra.mxu0 %v917
    %1038 = vmatprep.subr.mxu0 0.0
    %1039 = vmatpush2.msra.mxu0 0.0
    %1040 = vmatprep.subr.mxu0 0.0
    %1041 = vmatpush2.msra.mxu0 0.0
    %1042 = vmatprep.subr.mxu0 0.0
    %1043 = vmatpush2.msra.mxu0 0.0
    %1044 = vmatprep.subr.mxu0 0.0
    %1045 = vmatpush2.msra.mxu0 0.0
    %1046 = vmatprep.subr.mxu0 0.0
    %1047 = vmatpush2.msra.mxu0 0.0
    %1048 = vmatprep.subr.mxu0 0.0
    %1049 = vmatpush2.msra.mxu0 0.0
    %1050 = vmatprep.subr.mxu0 0.0
    %1051 = vmatpush2.msra.mxu0 0.0
    %1052 = vmatprep.subr.mxu0 0.0
    %1053 = vmatpush2.msra.mxu0 0.0
    %1054 = vmatprep.subr.mxu0 0.0
    %1055 = vmatpush2.msra.mxu0 0.0
    %1056 = vmatprep.subr.mxu0 0.0
    %1057 = vmatpush2.msra.mxu0 0.0
    %1058 = vmatprep.subr.mxu0 0.0
    %1059 = vmatpush2.msra.mxu0 0.0
    %1060 = vmatprep.subr.mxu0 0.0
    %1061 = vmatpush2.msra.mxu0 0.0
    %1062 = vmatprep.subr.mxu0 0.0
    %1063 = vmatpush2.msra.mxu0 0.0
    %1064 = vmatprep.subr.mxu0 0.0
    %1065 = vmatpush2.msra.mxu0 0.0
    %1066 = vmatprep.subr.mxu0 0.0
    %1067 = vmatpush2.msra.mxu0 0.0
    %1068 = vmatprep.subr.mxu0 0.0
    %1069 = vmatpush2.msra.mxu0 0.0
    %1070 = vmatprep.mubr.f32.mxu0 0.0
    %1071 = vmatmul.mubr.f32.gmra.mxu0 %v63
    %v1072 = vpop.f32.mrf.mxu0
    %v1073 = vadd.f32 %v998, %v1072
    %v1074 = vpop.f32.mrf.mxu0
    %1075 = vmatprep.mubr.f32.mxu0 0.0
    %1076 = vmatmul.mubr.f32.gmra.mxu0 %v66
    %v1077 = vpop.f32.mrf.mxu0
    %v1078 = vadd.f32 %v1003, %v1077
    %v1079 = vpop.f32.mrf.mxu0
    %1080 = vdwg.mxu0
    %v1081 = vld [vmem:[%s11] sm:$0x1]
    %v1083 = vlaneseq
    %v1084 = vshrl.u32 %v1083, 7
    %v1085 = vsub.s32 0, %v1084
    %v1086 = vrot.slane %v1081, %v1085
    %v1088 = vadd.f32 %v1073, %v1086
    %v1089 = vadd.f32 %v1078, %v1086
    %1090 = vst.msk [vmem:[#allocation2] sm:$0xff] %vm61, %v1088
    %1091 = vst.msk [vmem:[#allocation2 + $0x8] sm:$0xff] %vm61, %v1089
    // Predicated region
    $region50: #{tpu_custom_call.1} parent=1 // pred_check
      _
    $region51: #{tpu_custom_call.1} parent=1 // pred_check_branch
      %1093 = sbr.rel (0) target = $region53
    $region52: #{tpu_custom_call.1} parent=1 // pred_region
      %s1095 = ssub.s32 256, 256
      %1096 = vsyncadd [#allocation3], %s1095
      %s1097 = sshll.u32 [#allocation2], 4
      %s1098 = int_to_ptr.vmem [resolvable:$true] %s1097
      %1103 = dma.vmem_to_hbm [thread:$0]  %s1098, 256, %s12, [#allocation3], 128, 128, 8
    $region53: #{tpu_custom_call.1} parent=1 // pred_fallthru
      _
    // Predicated region
    $region54: #{tpu_custom_call.1} parent=1 // pred_check
      _
    $region55: #{tpu_custom_call.1} parent=1 // pred_check_branch
      %1105 = sbr.rel (0) target = $region57
    $region56: #{tpu_custom_call.1} parent=1 // pred_region
      %1106 = dma.done [#allocation3], 256
    $region57: #{tpu_custom_call.1} parent=1 // pred_fallthru
      _
    %1107 = vsyncpa [#allocation3], 1

</llo_original>
